<compile_context>
chip_gen: v7x
topology: tpu7x:2x2x1
jax: 0.10.0
libtpu: 0.0.40
codegen_flags: <defaults>
</compile_context>

<pallas_src>
import jax
import jax.numpy as jnp
from jax.experimental import pallas as pl
from jax.experimental.pallas import tpu as pltpu

_LANE = 128  # TPU lane width


def _round_up(x: int, m: int) -> int:
    return ((x + m - 1) // m) * m


def _critic_kernel(state_ref, action_ref, w1s_ref, w1a_ref, b1_ref,
                   w2_ref, b2_ref, w3_ref, b3_ref, out_ref):
    # ---- Layer 1 (f32 operands; tiny contraction, keep full input precision) ----
    # [tile_b, s] @ [s, h_pad]  +  [tile_b, a] @ [a, h_pad]
    h1 = jnp.dot(state_ref[...], w1s_ref[...], preferred_element_type=jnp.float32)
    h1 = h1 + jnp.dot(action_ref[...], w1a_ref[...], preferred_element_type=jnp.float32)
    h1 = jnp.maximum(h1 + b1_ref[...], 0.0)

    # ---- Layer 2 (bf16 MXU operands, f32 accumulate) ----
    h2 = jnp.dot(h1.astype(jnp.bfloat16), w2_ref[...], preferred_element_type=jnp.float32)
    h2 = jnp.maximum(h2 + b2_ref[...], 0.0)

    # ---- Layer 3: [tile_b, h_pad] @ [h_pad, 128] -> lane-dense [tile_b, 128] ----
    # w3 lives in column 0 of the padded weight; no transposes anywhere.
    q = jnp.dot(h2.astype(jnp.bfloat16), w3_ref[...], preferred_element_type=jnp.float32)
    out_ref[...] = (q + b3_ref[0]).astype(out_ref.dtype)


def critic_forward(state, action, params, *, max_tile_b: int = 2048, min_tiles: int = 1):
    """Critic forward pass as a single batch-tiled Pallas TPU kernel.

    state:  [B, state_dim]  float32
    action: [B, action_dim] float32
    params: (w1 [in,H], b1 [H], w2 [H,H], b2 [H], w3 [H,1], b3 []) float32,
            weights stored [in_features, out_features] (transposed vs torch).
    min_tiles: set to 2 on v7x to keep both TensorCores busy (grid axis is
               "parallel"); leave at 1 on v5e/v6e for the fewest grid steps.
    returns [B, 1] float32
    """
    w1, b1, w2, b2, w3, b3 = params
    B, state_dim = state.shape
    action_dim = action.shape[1]
    in_dim = state_dim + action_dim
    hidden = w1.shape[1]
    h_pad = _round_up(hidden, _LANE)

    # ---- Batch tiling: as few grid steps as possible (per-step cost ~0.35us) ----
    b8 = _round_up(B, 8)
    tile_b = min(max_tile_b, b8)
    num_tiles = max(int(min_tiles), pl.cdiv(b8, tile_b))
    tile_b = min(tile_b, _round_up(pl.cdiv(b8, num_tiles), 8))
    num_tiles = pl.cdiv(b8, tile_b)
    b_pad = num_tiles * tile_b  # rows B..b_pad compute garbage that is sliced off

    # ---- One-time weight/bias preparation (tiny arrays; exact zero padding) ----
    w1s = w1[:state_dim].astype(jnp.float32)                     # [s, H]
    w1a = w1[state_dim:].astype(jnp.float32)                     # [a, H]
    if h_pad != hidden:
        w1s = jnp.pad(w1s, ((0, 0), (0, h_pad - hidden)))
        w1a = jnp.pad(w1a, ((0, 0), (0, h_pad - hidden)))
    b1p = jnp.pad(b1.reshape(1, -1), ((0, 0), (0, h_pad - hidden))).astype(jnp.float32)
    w2p = jnp.pad(w2, ((0, h_pad - hidden), (0, h_pad - hidden))).astype(jnp.bfloat16)
    b2p = jnp.pad(b2.reshape(1, -1), ((0, 0), (0, h_pad - hidden))).astype(jnp.float32)
    # w3 -> column 0 of an [h_pad, 128] lane-dense block (MXU-natural layer 3).
    w3w = jnp.pad(w3.reshape(hidden, 1),
                  ((0, h_pad - hidden), (0, _LANE - 1))).astype(jnp.bfloat16)
    b3s = jnp.asarray(b3, jnp.float32).reshape((1,))

    # ---- Cost hint so XLA can schedule this small custom call sensibly ----
    flops = 2 * B * (in_dim * hidden + hidden * hidden + hidden)
    bytes_accessed = (
        int(state.size) * 4 + int(action.size) * 4
        + sum(int(a.size) * a.dtype.itemsize for a in (w1s, w1a, b1p, w2p, b2p, w3w))
        + b_pad * _LANE * 4
    )

    q_wide = pl.pallas_call(
        _critic_kernel,
        out_shape=jax.ShapeDtypeStruct((b_pad, _LANE), jnp.float32),
        grid=(num_tiles,),
        in_specs=[
            # Streamed raw activations: one batch tile per grid step (no wrapper
            # concat/pad/cast -> minimal HBM traffic on the dominant stream).
            pl.BlockSpec((tile_b, state_dim), lambda i: (i, 0)),
            pl.BlockSpec((tile_b, action_dim), lambda i: (i, 0)),
            # Weights/biases: constant block index -> VMEM-resident across steps.
            pl.BlockSpec((state_dim, h_pad), lambda i: (0, 0)),
            pl.BlockSpec((action_dim, h_pad), lambda i: (0, 0)),
            pl.BlockSpec((1, h_pad), lambda i: (0, 0)),
            pl.BlockSpec((h_pad, h_pad), lambda i: (0, 0)),
            pl.BlockSpec((1, h_pad), lambda i: (0, 0)),
            pl.BlockSpec((h_pad, _LANE), lambda i: (0, 0)),
            # Scalar output bias lives in SMEM.
            pl.BlockSpec(memory_space=pltpu.MemorySpace.SMEM),
        ],
        # Lane-dense unmasked stores: [tile_b, 128] block, Q lives in column 0.
        out_specs=pl.BlockSpec((tile_b, _LANE), lambda i: (i, 0)),
        compiler_params=pltpu.CompilerParams(
            dimension_semantics=("parallel",),      # shard batch tiles across TCs (v7x)
            vmem_limit_bytes=32 * 1024 * 1024,      # ample; worst case ~10 MiB at tile_b=2048
        ),
        cost_estimate=pl.CostEstimate(
            flops=flops, transcendentals=0, bytes_accessed=bytes_accessed),
    )(state, action, w1s, w1a, b1p, w2p, b2p, w3w, b3s)

    return q_wide[:B, :1]


def init_critic_params(key, state_dim, action_dim, hidden_dim=256, n_hidden=2):
    """Init mimicking torch.nn.Linear defaults (U[-1/sqrt(fan_in), 1/sqrt(fan_in)]).

    Weights use [in_features, out_features] layout (x @ W + b).
    """
    # TODO(synk): only the default n_hidden=2 stack is materialized here.
    assert n_hidden == 2, "this synthetic script instantiates the default n_hidden=2 stack"
    in_dim = state_dim + action_dim
    ks = jax.random.split(key, 6)

    def uniform(k_, shape, fan_in):
        bound = 1.0 / jnp.sqrt(jnp.float32(fan_in))
        return jax.random.uniform(k_, shape, jnp.float32, -bound, bound)

    w1 = uniform(ks[0], (in_dim, hidden_dim), in_dim)
    b1 = uniform(ks[1], (hidden_dim,), in_dim)
    w2 = uniform(ks[2], (hidden_dim, hidden_dim), hidden_dim)
    b2 = uniform(ks[3], (hidden_dim,), hidden_dim)
    w3 = uniform(ks[4], (hidden_dim, 1), hidden_dim)
    b3 = uniform(ks[5], (), hidden_dim)
    return (w1, b1, w2, b2, w3, b3)


def critic_reference(state, action, params):
    """Pure-JAX fp32 reference for correctness check."""
    w1, b1, w2, b2, w3, b3 = params
    sa = jnp.concatenate([state, action], axis=1)
    h1 = jnp.maximum(sa @ w1 + b1, 0.0)
    h2 = jnp.maximum(h1 @ w2 + b2, 0.0)
    return h2 @ w3 + b3


if __name__ == "__main__":
    # Small, deterministic example shapes (batch=8, state=17, action=6, hidden=32).
    B, STATE_DIM, ACTION_DIM, HIDDEN = 8, 17, 6, 32

    key = jax.random.PRNGKey(0)
    k_state, k_action, k_params = jax.random.split(key, 3)

    state = jax.random.normal(k_state, (B, STATE_DIM), jnp.float32)
    action = jax.random.normal(k_action, (B, ACTION_DIM), jnp.float32)
    params = init_critic_params(k_params, STATE_DIM, ACTION_DIM, hidden_dim=HIDDEN, n_hidden=2)

    q = critic_forward(state, action, params)
    q = jax.block_until_ready(q)

    q_ref = critic_reference(state, action, params)
    assert q.shape == (B, 1), q.shape
    # Layer 1 is f32; layers 2-3 use bf16 MXU operands with f32 accumulation.
    assert jnp.allclose(q, q_ref, atol=2e-2, rtol=2e-2), (q, q_ref)

    print("KERNEL_OK")
</pallas_src>

<mosaic_0001>
module attributes {stable_mosaic.version = 11 : i64} {
  func.func @_critic_kernel(%arg0: i32, %arg1: memref<8x17xf32, #tpu.memory_space<vmem>>, %arg2: memref<8x6xf32, #tpu.memory_space<vmem>>, %arg3: memref<17x128xf32, #tpu.memory_space<vmem>>, %arg4: memref<6x128xf32, #tpu.memory_space<vmem>>, %arg5: memref<1x128xf32, #tpu.memory_space<vmem>>, %arg6: memref<128x128xbf16, #tpu.memory_space<vmem>>, %arg7: memref<1x128xf32, #tpu.memory_space<vmem>>, %arg8: memref<128x128xbf16, #tpu.memory_space<vmem>>, %arg9: memref<1xf32, #tpu.memory_space<smem>>, %arg10: memref<8x128xf32, #tpu.memory_space<vmem>>) attributes {dimension_semantics = [#tpu.dimension_semantics<parallel>], iteration_bounds = array<i64: 1>, scalar_prefetch = 0 : i64, scratch_operands = 0 : i64, tpu.core_type = #tpu.core_type<tc>, window_params = [{transform_indices = @transform_0, window_bounds = array<i64: 8, 17>}, {transform_indices = @transform_1, window_bounds = array<i64: 8, 6>}, {pipeline_mode = #tpu.pipeline_mode<synchronous>, transform_indices = @transform_2, window_bounds = array<i64: 17, 128>}, {pipeline_mode = #tpu.pipeline_mode<synchronous>, transform_indices = @transform_3, window_bounds = array<i64: 6, 128>}, {pipeline_mode = #tpu.pipeline_mode<synchronous>, transform_indices = @transform_4, window_bounds = array<i64: 1, 128>}, {pipeline_mode = #tpu.pipeline_mode<synchronous>, transform_indices = @transform_5, window_bounds = array<i64: 128, 128>}, {pipeline_mode = #tpu.pipeline_mode<synchronous>, transform_indices = @transform_6, window_bounds = array<i64: 1, 128>}, {pipeline_mode = #tpu.pipeline_mode<synchronous>, transform_indices = @transform_7, window_bounds = array<i64: 128, 128>}, {transform_indices = @transform_8, window_bounds = array<i64: 1>}, {transform_indices = @transform_9, window_bounds = array<i64: 8, 128>}]} {
    %c0 = arith.constant 0 : index
    %c0_0 = arith.constant 0 : index
    %0 = vector.load %arg1[%c0, %c0_0] : memref<8x17xf32, #tpu.memory_space<vmem>>, vector<8x17xf32>
    %c0_1 = arith.constant 0 : index
    %c0_2 = arith.constant 0 : index
    %1 = vector.load %arg3[%c0_1, %c0_2] : memref<17x128xf32, #tpu.memory_space<vmem>>, vector<17x128xf32>
    %cst = arith.constant dense<0.000000e+00> : vector<8x128xf32>
    %2 = tpu.matmul %0, %1, %cst {dimension_numbers = #tpu.dot_dimension_numbers<[1], [0], [0], [1], [0, 0, 1, 1], [], []>} : vector<8x17xf32>, vector<17x128xf32>, vector<8x128xf32> -> vector<8x128xf32>
    %c0_3 = arith.constant 0 : index
    %c0_4 = arith.constant 0 : index
    %3 = vector.load %arg2[%c0_3, %c0_4] : memref<8x6xf32, #tpu.memory_space<vmem>>, vector<8x6xf32>
    %c0_5 = arith.constant 0 : index
    %c0_6 = arith.constant 0 : index
    %4 = vector.load %arg4[%c0_5, %c0_6] : memref<6x128xf32, #tpu.memory_space<vmem>>, vector<6x128xf32>
    %cst_7 = arith.constant dense<0.000000e+00> : vector<8x128xf32>
    %5 = tpu.matmul %3, %4, %cst_7 {dimension_numbers = #tpu.dot_dimension_numbers<[1], [0], [0], [1], [0, 0, 1, 1], [], []>} : vector<8x6xf32>, vector<6x128xf32>, vector<8x128xf32> -> vector<8x128xf32>
    %6 = arith.addf %2, %5 : vector<8x128xf32>
    %c0_8 = arith.constant 0 : index
    %c0_9 = arith.constant 0 : index
    %7 = vector.load %arg5[%c0_8, %c0_9] : memref<1x128xf32, #tpu.memory_space<vmem>>, vector<1x128xf32>
    %8 = vector.broadcast %7 : vector<1x128xf32> to vector<8x128xf32>
    %9 = arith.addf %6, %8 : vector<8x128xf32>
    %cst_10 = arith.constant 0.000000e+00 : f32
    %10 = vector.broadcast %cst_10 : f32 to vector<8x128xf32>
    %11 = arith.maximumf %9, %10 : vector<8x128xf32>
    %12 = arith.truncf %11 : vector<8x128xf32> to vector<8x128xbf16>
    %c0_11 = arith.constant 0 : index
    %c0_12 = arith.constant 0 : index
    %13 = vector.load %arg6[%c0_11, %c0_12] : memref<128x128xbf16, #tpu.memory_space<vmem>>, vector<128x128xbf16>
    %cst_13 = arith.constant dense<0.000000e+00> : vector<8x128xf32>
    %14 = tpu.matmul %12, %13, %cst_13 {dimension_numbers = #tpu.dot_dimension_numbers<[1], [0], [0], [1], [0, 0, 1, 1], [], []>} : vector<8x128xbf16>, vector<128x128xbf16>, vector<8x128xf32> -> vector<8x128xf32>
    %c0_14 = arith.constant 0 : index
    %c0_15 = arith.constant 0 : index
    %15 = vector.load %arg7[%c0_14, %c0_15] : memref<1x128xf32, #tpu.memory_space<vmem>>, vector<1x128xf32>
    %16 = vector.broadcast %15 : vector<1x128xf32> to vector<8x128xf32>
    %17 = arith.addf %14, %16 : vector<8x128xf32>
    %cst_16 = arith.constant 0.000000e+00 : f32
    %18 = vector.broadcast %cst_16 : f32 to vector<8x128xf32>
    %19 = arith.maximumf %17, %18 : vector<8x128xf32>
    %20 = arith.truncf %19 : vector<8x128xf32> to vector<8x128xbf16>
    %c0_17 = arith.constant 0 : index
    %c0_18 = arith.constant 0 : index
    %21 = vector.load %arg8[%c0_17, %c0_18] : memref<128x128xbf16, #tpu.memory_space<vmem>>, vector<128x128xbf16>
    %cst_19 = arith.constant dense<0.000000e+00> : vector<8x128xf32>
    %22 = tpu.matmul %20, %21, %cst_19 {dimension_numbers = #tpu.dot_dimension_numbers<[1], [0], [0], [1], [0, 0, 1, 1], [], []>} : vector<8x128xbf16>, vector<128x128xbf16>, vector<8x128xf32> -> vector<8x128xf32>
    %c0_20 = arith.constant 0 : index
    %23 = memref.load %arg9[%c0_20] : memref<1xf32, #tpu.memory_space<smem>>
    %24 = vector.broadcast %23 : f32 to vector<8x128xf32>
    %25 = arith.addf %22, %24 : vector<8x128xf32>
    %c0_21 = arith.constant 0 : index
    %c0_22 = arith.constant 0 : index
    %26 = vector.load %arg10[%c0_21, %c0_22] : memref<8x128xf32, #tpu.memory_space<vmem>>, vector<8x128xf32>
    tpu.vector_store %arg10[%c0_21, %c0_22], %25 {strides = array<i32>} : memref<8x128xf32, #tpu.memory_space<vmem>>, vector<8x128xf32>,
    return
  }
  func.func @transform_0(%arg0: i32) -> (i32, i32) {
    %c0_i32 = arith.constant 0 : i32
    %c0_i32_0 = arith.constant 0 : i32
    return %arg0, %c0_i32 : i32, i32
  }
  func.func @transform_1(%arg0: i32) -> (i32, i32) {
    %c0_i32 = arith.constant 0 : i32
    %c0_i32_0 = arith.constant 0 : i32
    return %arg0, %c0_i32 : i32, i32
  }
  func.func @transform_2(%arg0: i32) -> (i32, i32) {
    %c0_i32 = arith.constant 0 : i32
    %c0_i32_0 = arith.constant 0 : i32
    %c0_i32_1 = arith.constant 0 : i32
    return %c0_i32, %c0_i32_0 : i32, i32
  }
  func.func @transform_3(%arg0: i32) -> (i32, i32) {
    %c0_i32 = arith.constant 0 : i32
    %c0_i32_0 = arith.constant 0 : i32
    %c0_i32_1 = arith.constant 0 : i32
    return %c0_i32, %c0_i32_0 : i32, i32
  }
  func.func @transform_4(%arg0: i32) -> (i32, i32) {
    %c0_i32 = arith.constant 0 : i32
    %c0_i32_0 = arith.constant 0 : i32
    %c0_i32_1 = arith.constant 0 : i32
    return %c0_i32, %c0_i32_0 : i32, i32
  }
  func.func @transform_5(%arg0: i32) -> (i32, i32) {
    %c0_i32 = arith.constant 0 : i32
    %c0_i32_0 = arith.constant 0 : i32
    %c0_i32_1 = arith.constant 0 : i32
    return %c0_i32, %c0_i32_0 : i32, i32
  }
  func.func @transform_6(%arg0: i32) -> (i32, i32) {
    %c0_i32 = arith.constant 0 : i32
    %c0_i32_0 = arith.constant 0 : i32
    %c0_i32_1 = arith.constant 0 : i32
    return %c0_i32, %c0_i32_0 : i32, i32
  }
  func.func @transform_7(%arg0: i32) -> (i32, i32) {
    %c0_i32 = arith.constant 0 : i32
    %c0_i32_0 = arith.constant 0 : i32
    %c0_i32_1 = arith.constant 0 : i32
    return %c0_i32, %c0_i32_0 : i32, i32
  }
  func.func @transform_8(%arg0: i32) -> i32 {
    %c0_i32 = arith.constant 0 : i32
    %c0_i32_0 = arith.constant 0 : i32
    return %c0_i32 : i32
  }
  func.func @transform_9(%arg0: i32) -> (i32, i32) {
    %c0_i32 = arith.constant 0 : i32
    %c0_i32_0 = arith.constant 0 : i32
    return %arg0, %c0_i32 : i32, i32
  }
}

</mosaic_0001>

<llo_original>
// kernel: tpu_custom_call.1
$region0: #{tpu_custom_call.1}
  #allocation0 [shape = 'u32[]', space=smem, size = 0x4, offset = 0x4, fixed_abs, tag = 'smem constant byte address 0x4 - core index']
  #allocation1 [shape = 'u32[144,128]{1,0:T(1,128)}', space=vmem, size = 0x12000, scoped, tag = 'internal scratch']
  #allocation2 [shape = 'f32[1]{0:T(128)S(6)}', space=smem, size = 0x200, scoped, tag = 'scoped memory for tpu_custom_call.1']
  %s0 = inlined_call_operand.hbm [shape: f32[8,17], index: 0, kind: input, shape index: {}]
  %s1 = inlined_call_operand.hbm [shape: f32[8,6], index: 1, kind: input, shape index: {}]
  %s2 = inlined_call_operand.hbm [shape: f32[17,128], index: 2, kind: input, shape index: {}]
  %s3 = inlined_call_operand.vmem [shape: f32[6,128], index: 3, kind: input, shape index: {}]
  %s4 = inlined_call_operand.vmem [shape: f32[1,128], index: 4, kind: input, shape index: {}]
  %s5 = inlined_call_operand.hbm [shape: bf16[128,128], index: 5, kind: input, shape index: {}]
  %s6 = inlined_call_operand.vmem [shape: f32[1,128], index: 6, kind: input, shape index: {}]
  %s7 = inlined_call_operand.hbm [shape: bf16[128,128], index: 7, kind: input, shape index: {}]
  %s8 = inlined_call_operand.<no memory space> [shape: f32[1], index: 8, kind: input, shape index: {}]
  %s9 = inlined_call_operand.hbm [shape: f32[8,128], index: 9, kind: output, shape index: {}]
  %s10 = sld [smem:[#allocation0]]
  $region66: #{tpu_custom_call.1} parent=0
    _
  %s12 = ssub.s32 1, %s10
  %s13 = scalar_select 0, %s12, %s10
  %14 = sst [smem:[#allocation2]] %s8
  $region1: #{tpu_custom_call.1} parent=0
    #allocation3 [shape = 'u8[4096]{0}', space=vmem, size = 0x1000, scoped, tag = 'input window, operand 0, single buffered']
    #allocation4 [shape = 's32[1]{0}', space=sflag, size = 0x4, scoped, tag = 'scoped memory for tpu_custom_call.1']
    #allocation5 [shape = 's32[1]{0}', space=sflag, size = 0x4, scoped, tag = 'scoped memory for tpu_custom_call.1']
    #allocation6 [shape = 'u8[4096]{0}', space=vmem, size = 0x1000, scoped, tag = 'input window, operand 1, single buffered']
    #allocation7 [shape = 's32[1]{0}', space=sflag, size = 0x4, scoped, tag = 'scoped memory for tpu_custom_call.1']
    #allocation8 [shape = 'u8[12288]{0}', space=vmem, size = 0x3000, scoped, tag = 'input window, operand 2, single buffered']
    #allocation9 [shape = 'u8[32768]{0}', space=vmem, size = 0x8000, scoped, tag = 'input window, operand 5, single buffered']
    #allocation10 [shape = 's32[1]{0}', space=sflag, size = 0x4, scoped, tag = 'scoped memory for tpu_custom_call.1']
    #allocation11 [shape = 'u8[32768]{0}', space=vmem, size = 0x8000, scoped, tag = 'input window, operand 7, single buffered']
    #allocation12 [shape = 'u8[4096]{0}', space=vmem, size = 0x1000, scoped, tag = 'output window, operand 0, single buffered']
    %15 = vsyncpa [#allocation4], 0
    %16 = vsyncpa [#allocation7], 0
    %17 = vsyncpa [#allocation10], 0
    %18 = vsyncpa [#allocation5], 0
    // Predicated region
    $region2: #{tpu_custom_call.1} parent=1 // pred_check
      _
    $region3: #{tpu_custom_call.1} parent=1 // pred_check_branch
      %20 = sbr.rel (0) target = $region5
    $region4: #{tpu_custom_call.1} parent=1 // pred_region
      %s22 = ssub.s32 128, 128
      %23 = vsyncadd [#allocation4], %s22
      %s25 = sshll.u32 [#allocation3], 4
      %s26 = int_to_ptr.vmem [resolvable:$true] %s25
      %28 = dma.hbm_to_vmem [thread:$0]  %s0, 128, %s26, [#allocation4]
    $region5: #{tpu_custom_call.1} parent=1 // pred_fallthru
      _
    // Predicated region
    $region6: #{tpu_custom_call.1} parent=1 // pred_check
      _
    $region7: #{tpu_custom_call.1} parent=1 // pred_check_branch
      %30 = sbr.rel (0) target = $region9
    $region8: #{tpu_custom_call.1} parent=1 // pred_region
      %s32 = ssub.s32 128, 128
      %33 = vsyncadd [#allocation7], %s32
      %s35 = sshll.u32 [#allocation6], 4
      %s36 = int_to_ptr.vmem [resolvable:$true] %s35
      %38 = dma.hbm_to_vmem [thread:$0]  %s1, 128, %s36, [#allocation7]
    $region9: #{tpu_custom_call.1} parent=1 // pred_fallthru
      _
    // Predicated region
    $region10: #{tpu_custom_call.1} parent=1 // pred_check
      _
    $region11: #{tpu_custom_call.1} parent=1 // pred_check_branch
      %40 = sbr.rel (0) target = $region13
    $region12: #{tpu_custom_call.1} parent=1 // pred_region
      %s42 = ssub.s32 384, 384
      %43 = vsyncadd [#allocation7], %s42
      %s44 = sshll.u32 [#allocation8], 4
      %s45 = int_to_ptr.vmem [resolvable:$true] %s44
      %50 = dma.hbm_to_vmem [thread:$0]  %s2, 384, %s45, [#allocation7], 128, 128, 8
    $region13: #{tpu_custom_call.1} parent=1 // pred_fallthru
      _
    // Predicated region
    $region14: #{tpu_custom_call.1} parent=1 // pred_check
      _
    $region15: #{tpu_custom_call.1} parent=1 // pred_check_branch
      %52 = sbr.rel (0) target = $region17
    $region16: #{tpu_custom_call.1} parent=1 // pred_region
      _
    $region17: #{tpu_custom_call.1} parent=1 // pred_fallthru
      _
    // Predicated region
    $region18: #{tpu_custom_call.1} parent=1 // pred_check
      _
    $region19: #{tpu_custom_call.1} parent=1 // pred_check_branch
      %54 = sbr.rel (0) target = $region21
    $region20: #{tpu_custom_call.1} parent=1 // pred_region
      _
    $region21: #{tpu_custom_call.1} parent=1 // pred_fallthru
      _
    // Predicated region
    $region22: #{tpu_custom_call.1} parent=1 // pred_check
      _
    $region23: #{tpu_custom_call.1} parent=1 // pred_check_branch
      %56 = sbr.rel (0) target = $region25
    $region24: #{tpu_custom_call.1} parent=1 // pred_region
      %s58 = ssub.s32 1024, 1024
      %59 = vsyncadd [#allocation10], %s58
      %s60 = sshll.u32 [#allocation9], 4
      %s61 = int_to_ptr.vmem [resolvable:$true] %s60
      %66 = dma.hbm_to_vmem [thread:$0]  %s5, 1024, %s61, [#allocation10], 64, 64, 4
    $region25: #{tpu_custom_call.1} parent=1 // pred_fallthru
      _
    // Predicated region
    $region26: #{tpu_custom_call.1} parent=1 // pred_check
      _
    $region27: #{tpu_custom_call.1} parent=1 // pred_check_branch
      %68 = sbr.rel (0) target = $region29
    $region28: #{tpu_custom_call.1} parent=1 // pred_region
      _
    $region29: #{tpu_custom_call.1} parent=1 // pred_fallthru
      _
    // Predicated region
    $region30: #{tpu_custom_call.1} parent=1 // pred_check
      _
    $region31: #{tpu_custom_call.1} parent=1 // pred_check_branch
      %70 = sbr.rel (0) target = $region33
    $region32: #{tpu_custom_call.1} parent=1 // pred_region
      %s72 = ssub.s32 1024, 1024
      %73 = vsyncadd [#allocation10], %s72
      %s74 = sshll.u32 [#allocation11], 4
      %s75 = int_to_ptr.vmem [resolvable:$true] %s74
      %80 = dma.hbm_to_vmem [thread:$0]  %s7, 1024, %s75, [#allocation10], 64, 64, 4
    $region33: #{tpu_custom_call.1} parent=1 // pred_fallthru
      _
    // Predicated region
    $region34: #{tpu_custom_call.1} parent=1 // pred_check
      _
    $region35: #{tpu_custom_call.1} parent=1 // pred_check_branch
      %82 = sbr.rel (0) target = $region37
    $region36: #{tpu_custom_call.1} parent=1 // pred_region
      _
    $region37: #{tpu_custom_call.1} parent=1 // pred_fallthru
      _
    // Predicated region
    $region38: #{tpu_custom_call.1} parent=1 // pred_check
      _
    $region39: #{tpu_custom_call.1} parent=1 // pred_check_branch
      %84 = sbr.rel (0) target = $region41
    $region40: #{tpu_custom_call.1} parent=1 // pred_region
      %85 = dma.done [#allocation4], 128
    $region41: #{tpu_custom_call.1} parent=1 // pred_fallthru
      _
    // Predicated region
    $region42: #{tpu_custom_call.1} parent=1 // pred_check
      _
    $region43: #{tpu_custom_call.1} parent=1 // pred_check_branch
      %87 = sbr.rel (0) target = $region45
    $region44: #{tpu_custom_call.1} parent=1 // pred_region
      %88 = dma.done [#allocation7], 128
    $region45: #{tpu_custom_call.1} parent=1 // pred_fallthru
      _
    // Predicated region
    $region46: #{tpu_custom_call.1} parent=1 // pred_check
      _
    $region47: #{tpu_custom_call.1} parent=1 // pred_check_branch
      %90 = sbr.rel (0) target = $region49
    $region48: #{tpu_custom_call.1} parent=1 // pred_region
      %91 = dma.done [#allocation7], 384
    $region49: #{tpu_custom_call.1} parent=1 // pred_fallthru
      _
    // Predicated region
    $region50: #{tpu_custom_call.1} parent=1 // pred_check
      _
    $region51: #{tpu_custom_call.1} parent=1 // pred_check_branch
      %93 = sbr.rel (0) target = $region53
    $region52: #{tpu_custom_call.1} parent=1 // pred_region
      %94 = dma.done [#allocation10], 1024
    $region53: #{tpu_custom_call.1} parent=1 // pred_fallthru
      _
    // Predicated region
    $region54: #{tpu_custom_call.1} parent=1 // pred_check
      _
    $region55: #{tpu_custom_call.1} parent=1 // pred_check_branch
      %96 = sbr.rel (0) target = $region57
    $region56: #{tpu_custom_call.1} parent=1 // pred_region
      %97 = dma.done [#allocation10], 1024
    $region57: #{tpu_custom_call.1} parent=1 // pred_fallthru
      _
    %v99 = vld [vmem:[#allocation3] sm:$0xff]
    %v100 = vld [vmem:[#allocation8] sm:$0xff]
    %v101 = vld [vmem:[#allocation8 + $0x8] sm:$0xff]
    %v102 = vld [vmem:[#allocation8 + $0x10] sm:$0x1]
    %v103 = vld [vmem:[#allocation6] sm:$0xff]
    %v104 = vld [vmem:[%s3] sm:$0x3f]
    %vm105 = vcmask 48128
    %v107 = vsel %vm105, %v103, 0
    %vm109 = vcmask 1045504
    %v111 = vsel %vm109, %v104, 0
    %113 = vmatprep.subr.mxu0 0.0
    %114 = vmatpush1.msra.mxu0 %v111
    %115 = vmatprep.subr.mxu0 0.0
    %116 = vmatpush1.msra.mxu0 0.0
    %117 = vmatprep.subr.mxu0 0.0
    %118 = vmatpush1.msra.mxu0 0.0
    %119 = vmatprep.subr.mxu0 0.0
    %120 = vmatpush1.msra.mxu0 0.0
    %121 = vmatprep.subr.mxu0 0.0
    %122 = vmatpush1.msra.mxu0 0.0
    %123 = vmatprep.subr.mxu0 0.0
    %124 = vmatpush1.msra.mxu0 0.0
    %125 = vmatprep.subr.mxu0 0.0
    %126 = vmatpush1.msra.mxu0 0.0
    %127 = vmatprep.subr.mxu0 0.0
    %128 = vmatpush1.msra.mxu0 0.0
    %129 = vmatprep.subr.mxu0 0.0
    %130 = vmatpush1.msra.mxu0 0.0
    %131 = vmatprep.subr.mxu0 0.0
    %132 = vmatpush1.msra.mxu0 0.0
    %133 = vmatprep.subr.mxu0 0.0
    %134 = vmatpush1.msra.mxu0 0.0
    %135 = vmatprep.subr.mxu0 0.0
    %136 = vmatpush1.msra.mxu0 0.0
    %137 = vmatprep.subr.mxu0 0.0
    %138 = vmatpush1.msra.mxu0 0.0
    %139 = vmatprep.subr.mxu0 0.0
    %140 = vmatpush1.msra.mxu0 0.0
    %141 = vmatprep.subr.mxu0 0.0
    %142 = vmatpush1.msra.mxu0 0.0
    %143 = vmatprep.subr.mxu0 0.0
    %144 = vmatpush1.msra.mxu0 0.0
    %145 = vmatprep.subr.mxu0 0.0
    %146 = vmatpush1.msra.mxu0 0.0
    %147 = vmatprep.subr.mxu0 0.0
    %148 = vmatpush1.msra.mxu0 0.0
    %149 = vmatprep.subr.mxu0 0.0
    %150 = vmatpush1.msra.mxu0 0.0
    %151 = vmatprep.subr.mxu0 0.0
    %152 = vmatpush1.msra.mxu0 0.0
    %153 = vmatprep.subr.mxu0 0.0
    %154 = vmatpush1.msra.mxu0 0.0
    %155 = vmatprep.subr.mxu0 0.0
    %156 = vmatpush1.msra.mxu0 0.0
    %157 = vmatprep.subr.mxu0 0.0
    %158 = vmatpush1.msra.mxu0 0.0
    %159 = vmatprep.subr.mxu0 0.0
    %160 = vmatpush1.msra.mxu0 0.0
    %161 = vmatprep.subr.mxu0 0.0
    %162 = vmatpush1.msra.mxu0 0.0
    %163 = vmatprep.subr.mxu0 0.0
    %164 = vmatpush1.msra.mxu0 0.0
    %165 = vmatprep.subr.mxu0 0.0
    %166 = vmatpush1.msra.mxu0 0.0
    %167 = vmatprep.subr.mxu0 0.0
    %168 = vmatpush1.msra.mxu0 0.0
    %169 = vmatprep.subr.mxu0 0.0
    %170 = vmatpush1.msra.mxu0 0.0
    %171 = vmatprep.subr.mxu0 0.0
    %172 = vmatpush1.msra.mxu0 0.0
    %173 = vmatprep.subr.mxu0 0.0
    %174 = vmatpush1.msra.mxu0 0.0
    %175 = vmatprep.subr.mxu0 0.0
    %176 = vmatpush1.msra.mxu0 0.0
    %177 = vmatprep.mubr.f32.mxu0 0.0
    %178 = vmatmul.mubr.f32.gmra.mrb[0].mxu0 %v107
    %v179 = vpop.f32.mrb[0].mxu0
    %v180 = vadd.f32 0.0, %v179
    %v181 = vpop.f32.mrb[0].mxu0
    %182 = vdwg.mxu0
    %vm183 = vcmask 138240
    %v185 = vsel %vm183, %v99, 0
    %vm187 = vcmask 1040384
    %v189 = vsel %vm187, %v102, 0
    %191 = vmatprep.subr.mxu0 0.0
    %192 = vmatpush1.msra.mxu0 %v100
    %193 = vmatprep.subr.mxu0 0.0
    %194 = vmatpush1.msra.mxu0 %v101
    %195 = vmatprep.subr.mxu0 0.0
    %196 = vmatpush1.msra.mxu0 %v189
    %197 = vmatprep.subr.mxu0 0.0
    %198 = vmatpush1.msra.mxu0 0.0
    %199 = vmatprep.subr.mxu0 0.0
    %200 = vmatpush1.msra.mxu0 0.0
    %201 = vmatprep.subr.mxu0 0.0
    %202 = vmatpush1.msra.mxu0 0.0
    %203 = vmatprep.subr.mxu0 0.0
    %204 = vmatpush1.msra.mxu0 0.0
    %205 = vmatprep.subr.mxu0 0.0
    %206 = vmatpush1.msra.mxu0 0.0
    %207 = vmatprep.subr.mxu0 0.0
    %208 = vmatpush1.msra.mxu0 0.0
    %209 = vmatprep.subr.mxu0 0.0
    %210 = vmatpush1.msra.mxu0 0.0
    %211 = vmatprep.subr.mxu0 0.0
    %212 = vmatpush1.msra.mxu0 0.0
    %213 = vmatprep.subr.mxu0 0.0
    %214 = vmatpush1.msra.mxu0 0.0
    %215 = vmatprep.subr.mxu0 0.0
    %216 = vmatpush1.msra.mxu0 0.0
    %217 = vmatprep.subr.mxu0 0.0
    %218 = vmatpush1.msra.mxu0 0.0
    %219 = vmatprep.subr.mxu0 0.0
    %220 = vmatpush1.msra.mxu0 0.0
    %221 = vmatprep.subr.mxu0 0.0
    %222 = vmatpush1.msra.mxu0 0.0
    %223 = vmatprep.subr.mxu0 0.0
    %224 = vmatpush1.msra.mxu0 0.0
    %225 = vmatprep.subr.mxu0 0.0
    %226 = vmatpush1.msra.mxu0 0.0
    %227 = vmatprep.subr.mxu0 0.0
    %228 = vmatpush1.msra.mxu0 0.0
    %229 = vmatprep.subr.mxu0 0.0
    %230 = vmatpush1.msra.mxu0 0.0
    %231 = vmatprep.subr.mxu0 0.0
    %232 = vmatpush1.msra.mxu0 0.0
    %233 = vmatprep.subr.mxu0 0.0
    %234 = vmatpush1.msra.mxu0 0.0
    %235 = vmatprep.subr.mxu0 0.0
    %236 = vmatpush1.msra.mxu0 0.0
    %237 = vmatprep.subr.mxu0 0.0
    %238 = vmatpush1.msra.mxu0 0.0
    %239 = vmatprep.subr.mxu0 0.0
    %240 = vmatpush1.msra.mxu0 0.0
    %241 = vmatprep.subr.mxu0 0.0
    %242 = vmatpush1.msra.mxu0 0.0
    %243 = vmatprep.subr.mxu0 0.0
    %244 = vmatpush1.msra.mxu0 0.0
    %245 = vmatprep.subr.mxu0 0.0
    %246 = vmatpush1.msra.mxu0 0.0
    %247 = vmatprep.subr.mxu0 0.0
    %248 = vmatpush1.msra.mxu0 0.0
    %249 = vmatprep.subr.mxu0 0.0
    %250 = vmatpush1.msra.mxu0 0.0
    %251 = vmatprep.subr.mxu0 0.0
    %252 = vmatpush1.msra.mxu0 0.0
    %253 = vmatprep.subr.mxu0 0.0
    %254 = vmatpush1.msra.mxu0 0.0
    %255 = vmatprep.mubr.f32.mxu0 0.0
    %256 = vmatmul.mubr.f32.gmra.mrb[0].mxu0 %v185
    %v257 = vpop.f32.mrb[0].mxu0
    %v258 = vadd.f32 %v180, %v257
    %v259 = vpop.f32.mrb[0].mxu0
    %260 = vdwg.mxu0
    %v261 = vld [vmem:[%s4] sm:$0x1]
    %v263 = vlaneseq
    %v264 = vshrl.u32 %v263, 7
    %v265 = vsub.s32 0, %v264
    %v266 = vrot.slane %v261, %v265
    %v268 = vadd.f32 %v258, %v266
    %v269 = vmax.f32 %v268, 0.0
    %v270 = vpack.c.bf16 %v269, %v269
    %v271 = vld [vmem:[#allocation9] sm:$0xf]
    %v272 = vld [vmem:[#allocation9 + $0x4] sm:$0xf]
    %v273 = vld [vmem:[#allocation9 + $0x8] sm:$0xf]
    %v274 = vld [vmem:[#allocation9 + $0xc] sm:$0xf]
    %v275 = vld [vmem:[#allocation9 + $0x10] sm:$0xf]
    %v276 = vld [vmem:[#allocation9 + $0x14] sm:$0xf]
    %v277 = vld [vmem:[#allocation9 + $0x18] sm:$0xf]
    %v278 = vld [vmem:[#allocation9 + $0x1c] sm:$0xf]
    %v279 = vld [vmem:[#allocation9 + $0x20] sm:$0xf]
    %v280 = vld [vmem:[#allocation9 + $0x24] sm:$0xf]
    %v281 = vld [vmem:[#allocation9 + $0x28] sm:$0xf]
    %v282 = vld [vmem:[#allocation9 + $0x2c] sm:$0xf]
    %v283 = vld [vmem:[#allocation9 + $0x30] sm:$0xf]
    %v284 = vld [vmem:[#allocation9 + $0x34] sm:$0xf]
    %v285 = vld [vmem:[#allocation9 + $0x38] sm:$0xf]
    %v286 = vld [vmem:[#allocation9 + $0x3c] sm:$0xf]
    %v287 = vld [vmem:[%s6] sm:$0x1]
    %v289 = vlaneseq
    %v290 = vshrl.u32 %v289, 7
    %v291 = vsub.s32 0, %v290
    %v292 = vrot.slane %v287, %v291
    %v310 = vunpack.c.l.b16 %v271
    %v311 = vunpack.c.l.b16 %v272
    %v312 = vunpack.c.l.b16 %v273
    %v313 = vunpack.c.l.b16 %v274
    %v314 = vunpack.c.l.b16 %v275
    %v315 = vunpack.c.l.b16 %v276
    %v316 = vunpack.c.l.b16 %v277
    %v317 = vunpack.c.l.b16 %v278
    %v318 = vunpack.c.l.b16 %v279
    %v319 = vunpack.c.l.b16 %v280
    %v320 = vunpack.c.l.b16 %v281
    %v321 = vunpack.c.l.b16 %v282
    %v322 = vunpack.c.l.b16 %v283
    %v323 = vunpack.c.l.b16 %v284
    %v324 = vunpack.c.l.b16 %v285
    %v325 = vunpack.c.l.b16 %v286
    %v326 = vpack.c.b16 %v311, %v310
    %v327 = vpack.c.b16 %v313, %v312
    %v328 = vpack.c.b16 %v315, %v314
    %v329 = vpack.c.b16 %v317, %v316
    %v330 = vpack.c.b16 %v319, %v318
    %v331 = vpack.c.b16 %v321, %v320
    %v332 = vpack.c.b16 %v323, %v322
    %v333 = vpack.c.b16 %v325, %v324
    %342 = vmatprep.subr.bf16.mxu0 0
    %343 = vmatpush1.bf16.msra.mxu0 %v326
    %344 = vmatprep.subr.bf16.mxu0 0
    %345 = vmatpush1.bf16.msra.mxu0 %v327
    %346 = vmatprep.subr.bf16.mxu0 0
    %347 = vmatpush1.bf16.msra.mxu0 %v328
    %348 = vmatprep.subr.bf16.mxu0 0
    %349 = vmatpush1.bf16.msra.mxu0 %v329
    %350 = vmatprep.subr.bf16.mxu0 0
    %351 = vmatpush1.bf16.msra.mxu0 %v330
    %352 = vmatprep.subr.bf16.mxu0 0
    %353 = vmatpush1.bf16.msra.mxu0 %v331
    %354 = vmatprep.subr.bf16.mxu0 0
    %355 = vmatpush1.bf16.msra.mxu0 %v332
    %356 = vmatprep.subr.bf16.mxu0 0
    %357 = vmatpush1.bf16.msra.mxu0 %v333
    %358 = vmatprep.subr.bf16.mxu0 0
    %359 = vmatpush1.bf16.msra.mxu0 0
    %360 = vmatprep.subr.bf16.mxu0 0
    %361 = vmatpush1.bf16.msra.mxu0 0
    %362 = vmatprep.subr.bf16.mxu0 0
    %363 = vmatpush1.bf16.msra.mxu0 0
    %364 = vmatprep.subr.bf16.mxu0 0
    %365 = vmatpush1.bf16.msra.mxu0 0
    %366 = vmatprep.subr.bf16.mxu0 0
    %367 = vmatpush1.bf16.msra.mxu0 0
    %368 = vmatprep.subr.bf16.mxu0 0
    %369 = vmatpush1.bf16.msra.mxu0 0
    %370 = vmatprep.subr.bf16.mxu0 0
    %371 = vmatpush1.bf16.msra.mxu0 0
    %372 = vmatprep.subr.bf16.mxu0 0
    %373 = vmatpush1.bf16.msra.mxu0 0
    %374 = vmatprep.mubr.bf16.mxu0 0
    %375 = vmatmul.mubr.bf16.gmra.mrb[0].mxu0 %v270
    %v376 = vpop.f32.mrb[0].mxu0
    %v377 = vadd.f32 %v292, %v376
    %v378 = vpop.f32.mrb[0].mxu0
    %v379 = vpop.f32.mrb[0].mxu0
    %v380 = vpop.f32.mrb[0].mxu0
    %381 = vdwg.mxu0
    %v382 = vmax.f32 %v377, 0.0
    %v383 = vpack.c.bf16 %v382, %v382
    %v384 = vld [vmem:[#allocation11] sm:$0xf]
    %v385 = vld [vmem:[#allocation11 + $0x4] sm:$0xf]
    %v386 = vld [vmem:[#allocation11 + $0x8] sm:$0xf]
    %v387 = vld [vmem:[#allocation11 + $0xc] sm:$0xf]
    %v388 = vld [vmem:[#allocation11 + $0x10] sm:$0xf]
    %v389 = vld [vmem:[#allocation11 + $0x14] sm:$0xf]
    %v390 = vld [vmem:[#allocation11 + $0x18] sm:$0xf]
    %v391 = vld [vmem:[#allocation11 + $0x1c] sm:$0xf]
    %v392 = vld [vmem:[#allocation11 + $0x20] sm:$0xf]
    %v393 = vld [vmem:[#allocation11 + $0x24] sm:$0xf]
    %v394 = vld [vmem:[#allocation11 + $0x28] sm:$0xf]
    %v395 = vld [vmem:[#allocation11 + $0x2c] sm:$0xf]
    %v396 = vld [vmem:[#allocation11 + $0x30] sm:$0xf]
    %v397 = vld [vmem:[#allocation11 + $0x34] sm:$0xf]
    %v398 = vld [vmem:[#allocation11 + $0x38] sm:$0xf]
    %v399 = vld [vmem:[#allocation11 + $0x3c] sm:$0xf]
    %s400 = sld [smem:[#allocation2]]
    %v401 = vstv %s400
    %v418 = vunpack.c.l.b16 %v384
    %v419 = vunpack.c.l.b16 %v385
    %v420 = vunpack.c.l.b16 %v386
    %v421 = vunpack.c.l.b16 %v387
    %v422 = vunpack.c.l.b16 %v388
    %v423 = vunpack.c.l.b16 %v389
    %v424 = vunpack.c.l.b16 %v390
    %v425 = vunpack.c.l.b16 %v391
    %v426 = vunpack.c.l.b16 %v392
    %v427 = vunpack.c.l.b16 %v393
    %v428 = vunpack.c.l.b16 %v394
    %v429 = vunpack.c.l.b16 %v395
    %v430 = vunpack.c.l.b16 %v396
    %v431 = vunpack.c.l.b16 %v397
    %v432 = vunpack.c.l.b16 %v398
    %v433 = vunpack.c.l.b16 %v399
    %v434 = vpack.c.b16 %v419, %v418
    %v435 = vpack.c.b16 %v421, %v420
    %v436 = vpack.c.b16 %v423, %v422
    %v437 = vpack.c.b16 %v425, %v424
    %v438 = vpack.c.b16 %v427, %v426
    %v439 = vpack.c.b16 %v429, %v428
    %v440 = vpack.c.b16 %v431, %v430
    %v441 = vpack.c.b16 %v433, %v432
    %450 = vmatprep.subr.bf16.mxu0 0
    %451 = vmatpush1.bf16.msra.mxu0 %v434
    %452 = vmatprep.subr.bf16.mxu0 0
    %453 = vmatpush1.bf16.msra.mxu0 %v435
    %454 = vmatprep.subr.bf16.mxu0 0
    %455 = vmatpush1.bf16.msra.mxu0 %v436
    %456 = vmatprep.subr.bf16.mxu0 0
    %457 = vmatpush1.bf16.msra.mxu0 %v437
    %458 = vmatprep.subr.bf16.mxu0 0
    %459 = vmatpush1.bf16.msra.mxu0 %v438
    %460 = vmatprep.subr.bf16.mxu0 0
    %461 = vmatpush1.bf16.msra.mxu0 %v439
    %462 = vmatprep.subr.bf16.mxu0 0
    %463 = vmatpush1.bf16.msra.mxu0 %v440
    %464 = vmatprep.subr.bf16.mxu0 0
    %465 = vmatpush1.bf16.msra.mxu0 %v441
    %466 = vmatprep.subr.bf16.mxu0 0
    %467 = vmatpush1.bf16.msra.mxu0 0
    %468 = vmatprep.subr.bf16.mxu0 0
    %469 = vmatpush1.bf16.msra.mxu0 0
    %470 = vmatprep.subr.bf16.mxu0 0
    %471 = vmatpush1.bf16.msra.mxu0 0
    %472 = vmatprep.subr.bf16.mxu0 0
    %473 = vmatpush1.bf16.msra.mxu0 0
    %474 = vmatprep.subr.bf16.mxu0 0
    %475 = vmatpush1.bf16.msra.mxu0 0
    %476 = vmatprep.subr.bf16.mxu0 0
    %477 = vmatpush1.bf16.msra.mxu0 0
    %478 = vmatprep.subr.bf16.mxu0 0
    %479 = vmatpush1.bf16.msra.mxu0 0
    %480 = vmatprep.subr.bf16.mxu0 0
    %481 = vmatpush1.bf16.msra.mxu0 0
    %482 = vmatprep.mubr.bf16.mxu0 0
    %483 = vmatmul.mubr.bf16.gmra.mrb[0].mxu0 %v383
    %v484 = vpop.f32.mrb[0].mxu0
    %v485 = vadd.f32 %v401, %v484
    %v486 = vpop.f32.mrb[0].mxu0
    %v487 = vpop.f32.mrb[0].mxu0
    %v488 = vpop.f32.mrb[0].mxu0
    %489 = vdwg.mxu0
    %490 = vst [vmem:[#allocation12] sm:$0xff] %v485
    // Predicated region
    $region58: #{tpu_custom_call.1} parent=1 // pred_check
      _
    $region59: #{tpu_custom_call.1} parent=1 // pred_check_branch
      %492 = sbr.rel (0) target = $region61
    $region60: #{tpu_custom_call.1} parent=1 // pred_region
      %s494 = ssub.s32 128, 128
      %495 = vsyncadd [#allocation5], %s494
      %s497 = sshll.u32 [#allocation12], 4
      %s498 = int_to_ptr.vmem [resolvable:$true] %s497
      %500 = dma.vmem_to_hbm [thread:$0]  %s498, 128, %s9, [#allocation5]
    $region61: #{tpu_custom_call.1} parent=1 // pred_fallthru
      _
    // Predicated region
    $region62: #{tpu_custom_call.1} parent=1 // pred_check
      _
    $region63: #{tpu_custom_call.1} parent=1 // pred_check_branch
      %502 = sbr.rel (0) target = $region65
    $region64: #{tpu_custom_call.1} parent=1 // pred_region
      %503 = dma.done [#allocation5], 128
    $region65: #{tpu_custom_call.1} parent=1 // pred_fallthru
      _
    %504 = vsyncpa [#allocation4], 1
    %505 = vsyncpa [#allocation7], 1
    %506 = vsyncpa [#allocation10], 1
    %507 = vsyncpa [#allocation5], 1

</llo_original>
